<compile_context>
chip_gen: v6e
topology: v6e:2x2x1
jax: 0.10.0
libtpu: 0.0.40
codegen_flags: <defaults>
</compile_context>

<pallas_src>
import functools

import jax
import jax.numpy as jnp
from jax import lax
from jax.experimental import pallas as pl
from jax.experimental.pallas import tpu as pltpu

LN_EPS = 1e-5


def _round_up(x, m):
    return (x + m - 1) // m * m


def _vad_condition_kernel(x_ref, w_ref, p_ref, out_ref, *, dim):
    # One fused projection on the MXU: (tile_rows, K_pad) @ (K_pad, dim), f32 acc.
    x = jnp.dot(x_ref[...], w_ref[...], preferred_element_type=jnp.float32)
    x = x + p_ref[0:1, :]                      # fused bias (cond [+ history])

    # LayerNorm over the true hidden dim (block last dim == dim, no padding/mask).
    inv_dim = 1.0 / dim
    mean = jnp.sum(x, axis=-1, keepdims=True) * inv_dim
    centered = x - mean
    var = jnp.sum(centered * centered, axis=-1, keepdims=True) * inv_dim
    xhat = centered * lax.rsqrt(var + LN_EPS)
    out_ref[...] = (xhat * p_ref[1:2, :] + p_ref[2:3, :]).astype(out_ref.dtype)


@functools.partial(jax.jit, static_argnames=("out_dtype", "tile_rows_target"))
def vad_condition_pallas(vad, va_history, params, out_dtype=jnp.float32,
                         tile_rows_target=1024):
    """vad: (B, T, 2); va_history: (B, T, bins) or None; returns (B, T, dim)."""
    wc, bc = params["wc"], params["bc"]
    gamma, beta = params["gamma"], params["beta"]
    B, T, _ = vad.shape
    dim = wc.shape[1]
    N = B * T

    # --- Fuse the two projections in the wrapper (static branch on history). ---
    parts_x = [vad.reshape(N, 2).astype(jnp.float32)]
    parts_w = [wc.astype(jnp.float32)]
    bias = bc
    if va_history is not None:
        wh, bh = params["wh"], params["bh"]
        bins = wh.shape[0]
        parts_x.append(va_history.reshape(N, bins).astype(jnp.float32))
        parts_w.append(wh.astype(jnp.float32))
        bias = bc + bh

    # Pad the contraction dim to a multiple of 8 with zeros (no math change).
    K = sum(p.shape[1] for p in parts_x)
    K_pad = max(8, _round_up(K, 8))
    if K_pad != K:
        parts_x.append(jnp.zeros((N, K_pad - K), jnp.float32))
        parts_w.append(jnp.zeros((K_pad - K, dim), jnp.float32))
    x2d = jnp.concatenate(parts_x, axis=-1)            # (N, K_pad)
    w = jnp.concatenate(parts_w, axis=0)                # (K_pad, dim)

    # bias / gamma / beta stacked into one small grid-invariant constant.
    p = jnp.stack([bias, gamma, beta], axis=0).astype(jnp.float32)   # (3, dim)

    # --- Row tiling: big tiles for low per-step overhead, grid kept >= 2 when
    #     possible so v7x's two TensorCores both get work on the 'parallel' axis.
    #     Minimum tile respects the output dtype's sublane packing. ---
    min_rows = 8 * max(1, 4 // jnp.dtype(out_dtype).itemsize)        # 8 f32, 16 bf16
    tile_rows = min(tile_rows_target,
                    max(min_rows, _round_up(pl.cdiv(N, 2), min_rows)))
    N_pad = _round_up(N, tile_rows)
    if N_pad != N:
        x2d = jnp.pad(x2d, ((0, N_pad - N), (0, 0)))

    grid = (N_pad // tile_rows,)
    kernel = functools.partial(_vad_condition_kernel, dim=dim)

    out2d = pl.pallas_call(
        kernel,
        out_shape=jax.ShapeDtypeStruct((N_pad, dim), out_dtype),
        grid_spec=pltpu.PrefetchScalarGridSpec(
            num_scalar_prefetch=0,
            grid=grid,
            in_specs=[
                pl.BlockSpec((tile_rows, K_pad), lambda i: (i, 0)),  # fused input rows
                pl.BlockSpec((K_pad, dim), lambda i: (0, 0)),        # fused W^T (invariant)
                pl.BlockSpec((3, dim), lambda i: (0, 0)),            # bias/gamma/beta
            ],
            out_specs=pl.BlockSpec((tile_rows, dim), lambda i: (i, 0)),
        ),
        compiler_params=pltpu.CompilerParams(
            dimension_semantics=("parallel",)),
    )(x2d, w, p)

    if N_pad != N:
        out2d = out2d[:N]
    return out2d.reshape(B, T, dim)


def init_params(key, dim, bins):
    """Deterministic synthetic parameter init (PyTorch Linear / LayerNorm shapes)."""
    k1, k2, k3, k4 = jax.random.split(key, 4)
    # Stored already transposed to (in_features, dim) for the kernel.
    wc = jax.random.normal(k1, (2, dim), jnp.float32) * 0.5
    bc = jax.random.normal(k2, (dim,), jnp.float32) * 0.1
    wh = jax.random.normal(k3, (bins, dim), jnp.float32) * 0.5
    bh = jax.random.normal(k4, (dim,), jnp.float32) * 0.1
    gamma = jnp.ones((dim,), jnp.float32)
    beta = jnp.zeros((dim,), jnp.float32)
    return dict(wc=wc, bc=bc, wh=wh, bh=bh, gamma=gamma, beta=beta)


def vad_condition_ref(vad, va_history, params):
    """Pure-JAX reference mirroring the PyTorch forward."""
    x = vad @ params["wc"] + params["bc"]
    if va_history is not None:
        x = x + va_history @ params["wh"] + params["bh"]
    mean = jnp.mean(x, axis=-1, keepdims=True)
    var = jnp.mean((x - mean) ** 2, axis=-1, keepdims=True)
    xhat = (x - mean) / jnp.sqrt(var + LN_EPS)
    return xhat * params["gamma"] + params["beta"]


if __name__ == "__main__":
    B, T, dim, bins = 2, 8, 32, 5
    key = jax.random.PRNGKey(0)
    k_vad, k_hist, k_par = jax.random.split(key, 3)

    # vad is a per-speaker voice-activity signal in [0, 1].
    vad = jax.random.bernoulli(k_vad, 0.5, (B, T, 2)).astype(jnp.float32)
    va_history = jax.random.uniform(k_hist, (B, T, bins), jnp.float32)
    params = init_params(k_par, dim, bins)

    # With history (f32 output, strict tolerance).
    out = vad_condition_pallas(vad, va_history, params)
    out = jax.block_until_ready(out)
    ref = vad_condition_ref(vad, va_history, params)
    assert out.shape == (B, T, dim)
    assert jnp.allclose(out, ref, atol=1e-5, rtol=1e-5)

    # Without history (static None path -> no zero-streaming from HBM).
    out_nh = vad_condition_pallas(vad, None, params)
    out_nh = jax.block_until_ready(out_nh)
    ref_nh = vad_condition_ref(vad, None, params)
    assert jnp.allclose(out_nh, ref_nh, atol=1e-5, rtol=1e-5)

    # bf16 output variant (halves store bandwidth; math stays in f32).
    out_bf16 = vad_condition_pallas(vad, va_history, params,
                                    out_dtype=jnp.bfloat16)
    out_bf16 = jax.block_until_ready(out_bf16)
    assert out_bf16.dtype == jnp.bfloat16
    assert jnp.allclose(out_bf16.astype(jnp.float32), ref,
                        atol=5e-2, rtol=5e-2)

    print("KERNEL_OK")
</pallas_src>

<mosaic_0001>
module attributes {stable_mosaic.version = 11 : i64} {
  func.func @_vad_condition_kernel(%arg0: i32, %arg1: memref<8x8xf32, #tpu.memory_space<vmem>>, %arg2: memref<8x32xf32, #tpu.memory_space<vmem>>, %arg3: memref<3x32xf32, #tpu.memory_space<vmem>>, %arg4: memref<8x32xf32, #tpu.memory_space<vmem>>) attributes {dimension_semantics = [#tpu.dimension_semantics<parallel>], iteration_bounds = array<i64: 2>, scalar_prefetch = 0 : i64, scratch_operands = 0 : i64, tpu.core_type = #tpu.core_type<tc>, window_params = [{transform_indices = @transform_0, window_bounds = array<i64: 8, 8>}, {pipeline_mode = #tpu.pipeline_mode<synchronous>, transform_indices = @transform_1, window_bounds = array<i64: 8, 32>}, {pipeline_mode = #tpu.pipeline_mode<synchronous>, transform_indices = @transform_2, window_bounds = array<i64: 3, 32>}, {transform_indices = @transform_3, window_bounds = array<i64: 8, 32>}]} {
    %c0 = arith.constant 0 : index
    %c0_0 = arith.constant 0 : index
    %0 = vector.load %arg1[%c0, %c0_0] : memref<8x8xf32, #tpu.memory_space<vmem>>, vector<8x8xf32>
    %c0_1 = arith.constant 0 : index
    %c0_2 = arith.constant 0 : index
    %1 = vector.load %arg2[%c0_1, %c0_2] : memref<8x32xf32, #tpu.memory_space<vmem>>, vector<8x32xf32>
    %cst = arith.constant dense<0.000000e+00> : vector<8x32xf32>
    %2 = tpu.matmul %0, %1, %cst {dimension_numbers = #tpu.dot_dimension_numbers<[1], [0], [0], [1], [0, 0, 1, 1], [], []>} : vector<8x8xf32>, vector<8x32xf32>, vector<8x32xf32> -> vector<8x32xf32>
    %c0_3 = arith.constant 0 : index
    %c0_4 = arith.constant 0 : index
    %3 = vector.load %arg3[%c0_3, %c0_4] : memref<3x32xf32, #tpu.memory_space<vmem>>, vector<1x32xf32>
    %4 = vector.broadcast %3 : vector<1x32xf32> to vector<8x32xf32>
    %5 = arith.addf %2, %4 : vector<8x32xf32>
    %cst_5 = arith.constant dense<0.000000e+00> : vector<8xf32>
    %6 = vector.multi_reduction <add>, %5, %cst_5 [1] : vector<8x32xf32> to vector<8xf32>
    %7 = vector.shape_cast %6 : vector<8xf32> to vector<8x1xf32>
    %cst_6 = arith.constant 3.125000e-02 : f32
    %8 = vector.broadcast %cst_6 : f32 to vector<8x1xf32>
    %9 = arith.mulf %7, %8 : vector<8x1xf32>
    %10 = vector.broadcast %9 : vector<8x1xf32> to vector<8x32xf32>
    %11 = arith.subf %5, %10 : vector<8x32xf32>
    %12 = arith.mulf %11, %11 : vector<8x32xf32>
    %cst_7 = arith.constant dense<0.000000e+00> : vector<8xf32>
    %13 = vector.multi_reduction <add>, %12, %cst_7 [1] : vector<8x32xf32> to vector<8xf32>
    %14 = vector.shape_cast %13 : vector<8xf32> to vector<8x1xf32>
    %cst_8 = arith.constant 3.125000e-02 : f32
    %15 = vector.broadcast %cst_8 : f32 to vector<8x1xf32>
    %16 = arith.mulf %14, %15 : vector<8x1xf32>
    %cst_9 = arith.constant 9.99999974E-6 : f32
    %17 = vector.broadcast %cst_9 : f32 to vector<8x1xf32>
    %18 = arith.addf %16, %17 : vector<8x1xf32>
    %19 = math.rsqrt %18 : vector<8x1xf32>
    %20 = vector.broadcast %19 : vector<8x1xf32> to vector<8x32xf32>
    %21 = arith.mulf %11, %20 : vector<8x32xf32>
    %c1 = arith.constant 1 : index
    %c0_10 = arith.constant 0 : index
    %22 = vector.load %arg3[%c1, %c0_10] : memref<3x32xf32, #tpu.memory_space<vmem>>, vector<1x32xf32>
    %23 = vector.broadcast %22 : vector<1x32xf32> to vector<8x32xf32>
    %24 = arith.mulf %21, %23 : vector<8x32xf32>
    %c2 = arith.constant 2 : index
    %c0_11 = arith.constant 0 : index
    %25 = vector.load %arg3[%c2, %c0_11] : memref<3x32xf32, #tpu.memory_space<vmem>>, vector<1x32xf32>
    %26 = vector.broadcast %25 : vector<1x32xf32> to vector<8x32xf32>
    %27 = arith.addf %24, %26 : vector<8x32xf32>
    %c0_12 = arith.constant 0 : index
    %c0_13 = arith.constant 0 : index
    %28 = vector.load %arg4[%c0_12, %c0_13] : memref<8x32xf32, #tpu.memory_space<vmem>>, vector<8x32xf32>
    tpu.vector_store %arg4[%c0_12, %c0_13], %27 {strides = array<i32>} : memref<8x32xf32, #tpu.memory_space<vmem>>, vector<8x32xf32>,
    return
  }
  func.func @transform_0(%arg0: i32) -> (i32, i32) {
    %c0_i32 = arith.constant 0 : i32
    %c0_i32_0 = arith.constant 0 : i32
    return %arg0, %c0_i32 : i32, i32
  }
  func.func @transform_1(%arg0: i32) -> (i32, i32) {
    %c0_i32 = arith.constant 0 : i32
    %c0_i32_0 = arith.constant 0 : i32
    %c0_i32_1 = arith.constant 0 : i32
    return %c0_i32, %c0_i32_0 : i32, i32
  }
  func.func @transform_2(%arg0: i32) -> (i32, i32) {
    %c0_i32 = arith.constant 0 : i32
    %c0_i32_0 = arith.constant 0 : i32
    %c0_i32_1 = arith.constant 0 : i32
    return %c0_i32, %c0_i32_0 : i32, i32
  }
  func.func @transform_3(%arg0: i32) -> (i32, i32) {
    %c0_i32 = arith.constant 0 : i32
    %c0_i32_0 = arith.constant 0 : i32
    return %arg0, %c0_i32 : i32, i32
  }
}

</mosaic_0001>

<llo_original>
// kernel: vad_condition_pallas.1
$region0: #{vad_condition_pallas.1}
  #allocation0 [shape = 'u32[]', space=smem, size = 0x4, offset = 0x4, fixed_abs, tag = 'smem constant byte address 0x4 - core index']
  #allocation1 [shape = 'u32[144,128]{1,0:T(1,128)}', space=vmem, size = 0x12000, scoped, tag = 'internal scratch']
  %s0 = inlined_call_operand.vmem [shape: f32[16,8], index: 0, kind: input, shape index: {}]
  %s1 = inlined_call_operand.vmem [shape: f32[8,32], index: 1, kind: input, shape index: {}]
  %s2 = inlined_call_operand.vmem [shape: f32[3,32], index: 2, kind: input, shape index: {}]
  %s3 = inlined_call_operand.hbm [shape: f32[16,32], index: 3, kind: output, shape index: {}]
  %s4 = sld [smem:[#allocation0]]
  $region45: #{vad_condition_pallas.1} parent=0
    _
  %s6 = ssub.s32 1, %s4
  %s7 = scalar_select 0, %s6, %s4
  $region1: #{vad_condition_pallas.1} parent=0
    #allocation2 [shape = 'u8[8192]{0}', space=vmem, size = 0x2000, scoped, tag = 'output window, operand 0']
    #allocation3 [shape = 's32[2]{0}', space=sflag, size = 0x8, scoped, tag = 'scoped memory for vad_condition_pallas.1']
    %8 = vsyncpa [#allocation3], 0
    %s9 = scalar_lea.sflag [#allocation3], 1
    %10 = vsyncpa %s9, 0
    loop: start=0, step=1, limit=4
    $region2: #{vad_condition_pallas.1} parent=1 // loop_pre_header
      _
    $region3: #{vad_condition_pallas.1} parent=1 // loop_header
      %s12 = sphi 0, %s16
      %p13 = scmp.ge.s32.totalorder %s12, 4
      %s22 = sphi 0, %s24
      %s25 = sphi 0, %s22
      %s26 = sphi 0, %s25
      %s42 = sphi 0, %s26
      %s46 = sphi 0, %s46
      %s48 = sphi 0, %s46
      %s49 = sphi 0, %s48
      %s63 = sphi 0, %s49
      %s67 = sphi 0, %s67
      %s69 = sphi 0, %s67
      %s70 = sphi 0, %s69
      %s84 = sphi 0, %s70
      %s90 = sphi 0, %s92
      %s93 = sphi 0, %s90
      %s94 = sphi 0, %s93
      %s110 = sphi 0, %s94
    $region4: #{vad_condition_pallas.1} parent=1 // loop_header_branch
      %15 = sbr.rel (%p13) target = $region8
    $region5: #{vad_condition_pallas.1} parent=1 // loop_body
      %s17 = ssub.s32 %s12, 1
      %s18 = ssub.s32 %s12, 2
      %s19 = sadd.s32 %s12, 1
      %s20 = ssub.s32 %s12, %s19
      %p21 = scmp.eq.s32.totalorder %s20, 0
      %s23 = sadd.s32 %s22, 1
      %s24 = scalar_select %p21, %s22, %s23
      %p27 = pneg %p21
      %p28 = scmp.eq.s32.totalorder %s12, 1
      %p29 = por %p27, %p28
      %p30 = scmp.ne.s32.totalorder %s22, %s25
      %p31 = scmp.eq.s32.totalorder %s12, 0
      %p32 = por %p30, %p31
      %p33 = scmp.ne.s32.totalorder %s22, %s25
      %p34 = scmp.eq.s32.totalorder %s17, 1
      %p35 = por %p33, %p34
      %p36 = scmp.ne.s32.totalorder %s25, %s26
      %p37 = scmp.eq.s32.totalorder %s17, 0
      %p38 = por %p36, %p37
      %p39 = scmp.ne.s32.totalorder %s25, %s26
      %p40 = scmp.eq.s32.totalorder %s18, 1
      %p41 = por %p39, %p40
      %p43 = scmp.ne.s32.totalorder %s26, %s42
      %p44 = scmp.eq.s32.totalorder %s18, 0
      %p45 = por %p43, %p44
      %s47 = sadd.s32 %s46, 1
      %p50 = scmp.eq.s32.totalorder %s12, 1
      %p51 = scmp.ne.s32.totalorder %s46, %s48
      %p52 = scmp.eq.s32.totalorder %s12, 0
      %p53 = por %p51, %p52
      %p54 = scmp.ne.s32.totalorder %s46, %s48
      %p55 = scmp.eq.s32.totalorder %s17, 1
      %p56 = por %p54, %p55
      %p57 = scmp.ne.s32.totalorder %s48, %s49
      %p58 = scmp.eq.s32.totalorder %s17, 0
      %p59 = por %p57, %p58
      %p60 = scmp.ne.s32.totalorder %s48, %s49
      %p61 = scmp.eq.s32.totalorder %s18, 1
      %p62 = por %p60, %p61
      %p64 = scmp.ne.s32.totalorder %s49, %s63
      %p65 = scmp.eq.s32.totalorder %s18, 0
      %p66 = por %p64, %p65
      %s68 = sadd.s32 %s67, 1
      %p71 = scmp.eq.s32.totalorder %s12, 1
      %p72 = scmp.ne.s32.totalorder %s67, %s69
      %p73 = scmp.eq.s32.totalorder %s12, 0
      %p74 = por %p72, %p73
      %p75 = scmp.ne.s32.totalorder %s67, %s69
      %p76 = scmp.eq.s32.totalorder %s17, 1
      %p77 = por %p75, %p76
      %p78 = scmp.ne.s32.totalorder %s69, %s70
      %p79 = scmp.eq.s32.totalorder %s17, 0
      %p80 = por %p78, %p79
      %p81 = scmp.ne.s32.totalorder %s69, %s70
      %p82 = scmp.eq.s32.totalorder %s18, 1
      %p83 = por %p81, %p82
      %p85 = scmp.ne.s32.totalorder %s70, %s84
      %p86 = scmp.eq.s32.totalorder %s18, 0
      %p87 = por %p85, %p86
      %s88 = ssub.s32 %s12, %s19
      %p89 = scmp.eq.s32.totalorder %s88, 0
      %s91 = sadd.s32 %s90, 1
      %s92 = scalar_select %p89, %s90, %s91
      %p95 = pneg %p89
      %p96 = scmp.eq.s32.totalorder %s12, 1
      %p97 = por %p95, %p96
      %p98 = scmp.ne.s32.totalorder %s90, %s93
      %p99 = scmp.eq.s32.totalorder %s12, 0
      %p100 = por %p98, %p99
      %p101 = scmp.ne.s32.totalorder %s90, %s93
      %p102 = scmp.eq.s32.totalorder %s17, 1
      %p103 = por %p101, %p102
      %p104 = scmp.ne.s32.totalorder %s93, %s94
      %p105 = scmp.eq.s32.totalorder %s17, 0
      %p106 = por %p104, %p105
      %p107 = scmp.ne.s32.totalorder %s93, %s94
      %p108 = scmp.eq.s32.totalorder %s18, 1
      %p109 = por %p107, %p108
      %p111 = scmp.ne.s32.totalorder %s94, %s110
      %p112 = scmp.eq.s32.totalorder %s18, 0
      %p113 = por %p111, %p112
      %p114 = scmp.le.s32.totalorder 1, %s12
      %p115 = scmp.lt.s32.totalorder %s12, 3
      %p116 = pnand %p114, %p115
      %p117 = pneg %p116
      // Predicated region
      $region9: #{vad_condition_pallas.1} parent=5 // pred_check
        _
      $region10: #{vad_condition_pallas.1} parent=5 // pred_check_branch
        %119 = sbr.rel (%p116) target = $region12
      $region11: #{vad_condition_pallas.1} parent=5 // pred_region
        %s120 = ssub.s32 %s12, 1
        // Predicated region
        $region13: #{vad_condition_pallas.1} parent=11 // pred_check
          %p121 = pneg %p59
        $region14: #{vad_condition_pallas.1} parent=11 // pred_check_branch
          %123 = sbr.rel (%p121) target = $region16
        $region15: #{vad_condition_pallas.1} parent=11 // pred_region
          _
        $region16: #{vad_condition_pallas.1} parent=11 // pred_fallthru
          _
        // Predicated region
        $region17: #{vad_condition_pallas.1} parent=11 // pred_check
          %p124 = pneg %p80
        $region18: #{vad_condition_pallas.1} parent=11 // pred_check_branch
          %126 = sbr.rel (%p124) target = $region20
        $region19: #{vad_condition_pallas.1} parent=11 // pred_region
          _
        $region20: #{vad_condition_pallas.1} parent=11 // pred_fallthru
          _
      $region12: #{vad_condition_pallas.1} parent=5 // pred_fallthru
        _
      %p127 = scmp.lt.s32.totalorder %s12, 2
      // Predicated region
      $region21: #{vad_condition_pallas.1} parent=5 // pred_check
        %p128 = pneg %p127
      $region22: #{vad_condition_pallas.1} parent=5 // pred_check_branch
        %130 = sbr.rel (%p128) target = $region24
      $region23: #{vad_condition_pallas.1} parent=5 // pred_region
        // Predicated region
        $region25: #{vad_condition_pallas.1} parent=23 // pred_check
          %p131 = pneg %p32
        $region26: #{vad_condition_pallas.1} parent=23 // pred_check_branch
          %133 = sbr.rel (%p131) target = $region28
        $region27: #{vad_condition_pallas.1} parent=23 // pred_region
          %p134 = scmp.lt.s32.totalorder %s12, 1
          %s135 = scalar_select %p134, %s12, 1
          %s136 = smul.addr %s135, 8
          %s137 = scalar_lea.vmem %s0, %s136
        $region28: #{vad_condition_pallas.1} parent=23 // pred_fallthru
          _
      $region24: #{vad_condition_pallas.1} parent=5 // pred_fallthru
        _
      %p138 = scmp.le.s32.totalorder 1, %s12
      %p139 = scmp.lt.s32.totalorder %s12, 3
      %p140 = pnand %p138, %p139
      %p141 = pneg %p140
      // Predicated region
      $region29: #{vad_condition_pallas.1} parent=5 // pred_check
        _
      $region30: #{vad_condition_pallas.1} parent=5 // pred_check_branch
        %143 = sbr.rel (%p140) target = $region32
      $region31: #{vad_condition_pallas.1} parent=5 // pred_region
        %s144 = ssub.s32 %s12, 1
        %p145 = scmp.lt.s32.totalorder %s17, 1
        %s146 = scalar_select %p145, %s17, 1
        %s147 = smul.addr %s146, 8
        %s148 = scalar_lea.vmem %s0, %s147
        %p149 = pneg %p38
        %p150 = pneg %p35
        %p151 = pneg %p59
        %p152 = pneg %p56
        %p153 = pneg %p80
        %p154 = pneg %p77
        %p155 = pneg %p106
        %p156 = pneg %p103
        %s157 = sand.u32 %s93, 1
        %s158 = scalar_lea.sflag [#allocation3], %s157
        %s159 = sand.u32 %s93, 1
        %s160 = smul.addr %s159, 8
        %s161 = scalar_lea.vmem [#allocation2], %s160
        %p162 = scmp.lt.s32.totalorder %s17, 1
        %s163 = scalar_select %p162, %s17, 1
        %s164 = smul.addr %s163, 8
        %s165 = scalar_lea.vmem %s0, %s164
        %v166 = vld [vmem:[%s165] sm:$0xff]
        %v167 = vld [vmem:[%s1] sm:$0xff]
        %v168 = vld [vmem:[%s2] sm:$0x1]
        %v169 = vlaneseq
        %v170 = vshrl.u32 %v169, 7
        %v171 = vsub.s32 0, %v170
        %v172 = vrot.slane %v168, %v171
        %vm173 = vcmask 64512
        %v175 = vsel %vm173, %v166, 0
        %177 = vmatprep.subr.mxu0 0.0
        %178 = vmatpush1.msra.mxu0 0.0
        %179 = vmatprep.subr.mxu0 0.0
        %180 = vmatpush1.msra.mxu0 0.0
        %181 = vmatprep.subr.mxu0 0.0
        %182 = vmatpush1.msra.mxu0 0.0
        %183 = vmatprep.subr.mxu0 0.0
        %184 = vmatpush1.msra.mxu0 0.0
        %185 = vmatprep.subr.mxu0 0.0
        %186 = vmatpush1.msra.mxu0 0.0
        %187 = vmatprep.subr.mxu0 0.0
        %188 = vmatpush1.msra.mxu0 0.0
        %189 = vmatprep.subr.mxu0 0.0
        %190 = vmatpush1.msra.mxu0 0.0
        %191 = vmatprep.subr.mxu0 0.0
        %192 = vmatpush1.msra.mxu0 0.0
        %193 = vmatprep.subr.mxu0 0.0
        %194 = vmatpush1.msra.mxu0 0.0
        %195 = vmatprep.subr.mxu0 0.0
        %196 = vmatpush1.msra.mxu0 0.0
        %197 = vmatprep.subr.mxu0 0.0
        %198 = vmatpush1.msra.mxu0 0.0
        %199 = vmatprep.subr.mxu0 0.0
        %200 = vmatpush1.msra.mxu0 0.0
        %201 = vmatprep.subr.mxu0 0.0
        %202 = vmatpush1.msra.mxu0 0.0
        %203 = vmatprep.subr.mxu0 0.0
        %204 = vmatpush1.msra.mxu0 0.0
        %205 = vmatprep.subr.mxu0 0.0
        %206 = vmatpush1.msra.mxu0 0.0
        %207 = vmatprep.subr.mxu0 0.0
        %208 = vmatpush1.msra.mxu0 %v167
        %209 = vmatprep.subr.mxu0 0.0
        %210 = vmatpush2.msra.mxu0 0.0
        %211 = vmatprep.subr.mxu0 0.0
        %212 = vmatpush2.msra.mxu0 0.0
        %213 = vmatprep.subr.mxu0 0.0
        %214 = vmatpush2.msra.mxu0 0.0
        %215 = vmatprep.subr.mxu0 0.0
        %216 = vmatpush2.msra.mxu0 0.0
        %217 = vmatprep.subr.mxu0 0.0
        %218 = vmatpush2.msra.mxu0 0.0
        %219 = vmatprep.subr.mxu0 0.0
        %220 = vmatpush2.msra.mxu0 0.0
        %221 = vmatprep.subr.mxu0 0.0
        %222 = vmatpush2.msra.mxu0 0.0
        %223 = vmatprep.subr.mxu0 0.0
        %224 = vmatpush2.msra.mxu0 0.0
        %225 = vmatprep.subr.mxu0 0.0
        %226 = vmatpush2.msra.mxu0 0.0
        %227 = vmatprep.subr.mxu0 0.0
        %228 = vmatpush2.msra.mxu0 0.0
        %229 = vmatprep.subr.mxu0 0.0
        %230 = vmatpush2.msra.mxu0 0.0
        %231 = vmatprep.subr.mxu0 0.0
        %232 = vmatpush2.msra.mxu0 0.0
        %233 = vmatprep.subr.mxu0 0.0
        %234 = vmatpush2.msra.mxu0 0.0
        %235 = vmatprep.subr.mxu0 0.0
        %236 = vmatpush2.msra.mxu0 0.0
        %237 = vmatprep.subr.mxu0 0.0
        %238 = vmatpush2.msra.mxu0 0.0
        %239 = vmatprep.subr.mxu0 0.0
        %240 = vmatpush2.msra.mxu0 0.0
        %241 = vmatprep.mubr.f32.mxu0 0.0
        %242 = vmatmul.mubr.f32.gmra.mxu0 %v175
        %v243 = vpop.f32.mrf.mxu0
        %v244 = vadd.f32 %v172, %v243
        %v245 = vpop.f32.mrf.mxu0
        %246 = vdwg.mxu0
        %vm247 = vcmask 261120
        %v248 = vsel %vm247, %v244, 0.0
        %249 = vadd.xlane.f32.xlu0 %v248
        %v250 = vpop.xlane.xlu0 %249
        %v251 = vmul.f32 %v250, 0.03125
        %v252 = vsub.f32 %v244, %v251
        %v253 = vmul.f32 %v252, %v252
        %v254 = vsel %vm247, %v253, 0.0
        %255 = vadd.xlane.f32.xlu0 %v254
        %v256 = vpop.xlane.xlu0 %255
        %v257 = vmul.f32 %v256, 0.03125
        %v258 = vadd.f32 %v257, 1e-05
        %v259 = vrsqrt.pop %v258
        %v260 = vmul.f32 %v252, %v259
        %v261 = vld [vmem:[%s2 + $0x1] sm:$0x1]
        %v262 = vlaneseq
        %v263 = vshrl.u32 %v262, 7
        %v264 = vsub.s32 0, %v263
        %v265 = vrot.slane %v261, %v264
        %v266 = vmul.f32 %v260, %v265
        %v267 = vld [vmem:[%s2 + $0x2] sm:$0x1]
        %v268 = vlaneseq
        %v269 = vshrl.u32 %v268, 7
        %v270 = vsub.s32 0, %v269
        %v271 = vrot.slane %v267, %v270
        %v272 = vadd.f32 %v266, %v271
        %273 = vst.msk [vmem:[%s161] sm:$0xff] %vm247, %v272
        %s274 = sand.u32 %s93, 1
        %s275 = scalar_lea.sflag [#allocation3], %s274
        %s276 = sand.u32 %s93, 1
        %s277 = smul.addr %s276, 8
        %s278 = scalar_lea.vmem [#allocation2], %s277
        // Predicated region
        $region33: #{vad_condition_pallas.1} parent=31 // pred_check
          %p279 = pneg %p103
        $region34: #{vad_condition_pallas.1} parent=31 // pred_check_branch
          %281 = sbr.rel (%p279) target = $region36
        $region35: #{vad_condition_pallas.1} parent=31 // pred_region
          %s283 = ssub.s32 128, 128
          %284 = vsyncadd %s275, %s283
          %s285 = smul.addr %s17, 128
          %s286 = scalar_lea.hbm %s3, %s285
          %s288 = sshll.u32 %s278, 4
          %s289 = int_to_ptr.vmem [resolvable:$true] %s288
          %291 = dma.vmem_to_hbm [thread:$0]  %s289, 128, %s286, %s275
        $region36: #{vad_condition_pallas.1} parent=31 // pred_fallthru
          _
      $region32: #{vad_condition_pallas.1} parent=5 // pred_fallthru
        _
      %p292 = scmp.le.s32.totalorder 2, %s12
      // Predicated region
      $region37: #{vad_condition_pallas.1} parent=5 // pred_check
        %p293 = pneg %p292
      $region38: #{vad_condition_pallas.1} parent=5 // pred_check_branch
        %295 = sbr.rel (%p293) target = $region40
      $region39: #{vad_condition_pallas.1} parent=5 // pred_region
        %s296 = ssub.s32 %s12, 2
        // Predicated region
        $region41: #{vad_condition_pallas.1} parent=39 // pred_check
          %p297 = pneg %p109
        $region42: #{vad_condition_pallas.1} parent=39 // pred_check_branch
          %299 = sbr.rel (%p297) target = $region44
        $region43: #{vad_condition_pallas.1} parent=39 // pred_region
          %s300 = sand.u32 %s94, 1
          %s301 = scalar_lea.sflag [#allocation3], %s300
          %s302 = sand.u32 %s94, 1
          %s303 = smul.addr %s302, 8
          %s304 = scalar_lea.vmem [#allocation2], %s303
          %305 = dma.done %s301, 128
        $region44: #{vad_condition_pallas.1} parent=39 // pred_fallthru
          _
      $region40: #{vad_condition_pallas.1} parent=5 // pred_fallthru
        _
    $region6: #{vad_condition_pallas.1} parent=1 // loop_footer
      %s16 = sadd.s32 1, %s12
    $region7: #{vad_condition_pallas.1} parent=1 // loop_footer_branch
      %11 = sbr.rel target = $region3
    $region8: #{vad_condition_pallas.1} parent=1 // loop_exit
      _
    %306 = vsyncpa [#allocation3], 1
    %s307 = scalar_lea.sflag [#allocation3], 1
    %308 = vsyncpa %s307, 1

</llo_original>
